<compile_context>
chip_gen: v7x
topology: tpu7x:2x2x1
jax: 0.10.0
libtpu: 0.0.40
codegen_flags: <defaults>
</compile_context>

<pallas_src>
import functools

import jax
import jax.numpy as jnp
from jax import lax
from jax.experimental import pallas as pl
from jax.experimental.pallas import tpu as pltpu

LANES = 128  # lane-pad the box axis to one full vreg width


def _giou_loss_kernel(gt_ref, pr_ref, loss_ref, *, n, eps):
    gt = gt_ref[...]    # (4, LANES); rows = x1, y1, x2, y2; lanes = boxes (SoA)
    pr = pr_ref[...]

    # Full-vreg corner math (2 VALU ops instead of 8 per-coordinate ones).
    mx = jnp.maximum(gt, pr)                         # (4, LANES)
    mn = jnp.minimum(gt, pr)

    # ---- iou_func ----
    gt_sz = gt[2:4] - gt[0:2]                        # (2, LANES): w row, h row
    pr_sz = pr[2:4] - pr[0:2]
    gt_area = gt_sz[0:1] * gt_sz[1:2]                # (1, LANES)
    pr_area = pr_sz[0:1] * pr_sz[1:2]
    wh = jnp.maximum(mn[2:4] - mx[0:2] + eps, 0.0)   # intersection w/h
    inter = wh[0:1] * wh[1:2]
    union = gt_area + pr_area - inter
    iou = inter / union                              # exact divide (parity)

    # ---- giou_func ----
    ewh = jnp.maximum(mx[2:4] - mn[0:2] + eps, 0.0)  # enclosure w/h
    enclosure = ewh[0:1] * ewh[1:2]
    renc = 1.0 / enclosure                           # one lane-wide reciprocal
    # Reference quirk: "union2" = coordinate squares, shape (N, 2); boxes on lanes.
    u2 = gt[0:2] * gt[0:2] + pr[0:2] * pr[0:2]       # (2, LANES): rows = x, y

    # Reference broadcast (only defined for n in {1, 2}):
    #   loss[i, j] = 1 - iou[cj] + (enc[cj] - u2[i, j]) / enc[cj]
    #              = 2 - iou[cj] - u2[i, j] * renc[cj]
    # where cj = j for n == 2 and cj = 0 for n == 1 (torch broadcasting rule).
    packed = jnp.concatenate([iou, renc], axis=0)    # (2, LANES): [iou; renc]
    lane = lax.broadcasted_iota(jnp.int32, packed.shape, 1)

    def lane_at(c):
        # (2, 1) = [iou[c]; renc[c]] via a single masked lane-reduce (XLU).
        return jnp.sum(jnp.where(lane == c, packed, 0.0), axis=1, keepdims=True)

    e0 = lane_at(0)
    e1 = e0 if n < 2 else lane_at(1)
    iou0, renc0 = e0[0:1], e0[1:2]
    iou1, renc1 = e1[0:1], e1[1:2]

    # Lane-dense transposed output: out[j, i] = loss[i, j].
    row0 = 2.0 - iou0 - u2[0:1] * renc0              # reference column j == 0
    row1 = 2.0 - iou1 - u2[1:2] * renc1              # reference column j == 1
    loss_ref[...] = jnp.concatenate([row0, row1], axis=0)   # (2, LANES)


@functools.partial(jax.jit, static_argnames=("n", "eps", "reduction"))
def _giou_loss_impl(pr, gt, *, n, eps, reduction):
    # (N, 4) xyxy -> (4, LANES) SoA; padded lanes replicate the last valid box
    # (benign: positive union/enclosure, no NaN/Inf anywhere).
    def to_soa(boxes):
        return jnp.pad(boxes.T, ((0, 0), (0, LANES - n)), mode="edge")

    kernel = functools.partial(_giou_loss_kernel, n=n, eps=eps)
    loss_block = pl.pallas_call(
        kernel,
        out_shape=jax.ShapeDtypeStruct((2, LANES), jnp.float32),
        # Tiny single-block problem (~few KiB): whole SoA arrays in VMEM; no grid.
        in_specs=[pl.BlockSpec(memory_space=pltpu.MemorySpace.VMEM),
                  pl.BlockSpec(memory_space=pltpu.MemorySpace.VMEM)],
        out_specs=pl.BlockSpec(memory_space=pltpu.MemorySpace.VMEM),
    )(to_soa(gt), to_soa(pr))

    # Valid region, back to the reference's (N, 2) broadcast shape.
    loss = loss_block[:, :n].T
    if reduction == "mean":
        return jnp.mean(loss)
    if reduction == "sum":
        return jnp.sum(loss)
    return loss


def giou_loss(pr_bboxes, gt_bboxes, eps=1e-5, reduction="mean"):
    """Pallas wrapper. pr_bboxes/gt_bboxes: (N, 4) xyxy, float32, N in {1, 2}."""
    pr = jnp.asarray(pr_bboxes, jnp.float32)
    gt = jnp.asarray(gt_bboxes, jnp.float32)
    n = int(pr.shape[0])
    if n < 1 or n > 2:
        raise ValueError(
            "The reference giou_func only broadcasts for N in {1, 2} "
            f"(got N={n}); see the union-shape quirk reproduced here.")
    return _giou_loss_impl(pr, gt, n=n, eps=float(eps), reduction=reduction)


class GIOULoss:
    """Mirror of the PyTorch nn.Module (no learnable parameters)."""

    def __init__(self, eps=1e-5, reduction="mean"):
        self.eps = eps
        self.reduction = reduction

    def __call__(self, pr_bboxes, gt_bboxes):
        return giou_loss(pr_bboxes, gt_bboxes, self.eps, self.reduction)


def _reference_giou_loss(pr, gt, eps=1e-5, reduction="mean"):
    """Pure-JAX reference (same quirky broadcast as the PyTorch module)."""
    gt_area = (gt[:, 2] - gt[:, 0]) * (gt[:, 3] - gt[:, 1])
    pr_area = (pr[:, 2] - pr[:, 0]) * (pr[:, 3] - pr[:, 1])
    lt = jnp.maximum(gt[:, :2], pr[:, :2])
    rb = jnp.minimum(gt[:, 2:], pr[:, 2:])
    wh = jnp.maximum(rb - lt + eps, 0.0)
    inter = wh[:, 0] * wh[:, 1]
    iou = inter / (gt_area + pr_area - inter)
    lt2 = jnp.minimum(gt[:, :2], pr[:, :2])
    rb2 = jnp.maximum(gt[:, 2:], pr[:, 2:])
    wh2 = jnp.maximum(rb2 - lt2 + eps, 0.0)
    enclosure = wh2[:, 0] * wh2[:, 1]
    union2 = gt[:, :2] * gt[:, :2] + pr[:, :2] * pr[:, :2]
    giou = iou - (enclosure - union2) / enclosure
    loss = 1.0 - giou
    if reduction == "mean":
        return jnp.mean(loss)
    if reduction == "sum":
        return jnp.sum(loss)
    return loss


if __name__ == "__main__":
    key = jax.random.PRNGKey(0)
    k1, k2, k3, k4 = jax.random.split(key, 4)

    # N = 2 boxes (the only N > 1 for which the reference forward type-checks).
    N = 2
    gt_tl = jax.random.uniform(k1, (N, 2), jnp.float32) * 10.0
    gt_wh = jax.random.uniform(k2, (N, 2), jnp.float32) * 5.0 + 1.0
    gt_bboxes = jnp.concatenate([gt_tl, gt_tl + gt_wh], axis=1)      # (N, 4) xyxy

    pr_tl = gt_tl + jax.random.uniform(k3, (N, 2), jnp.float32) * 2.0 - 1.0
    pr_wh = gt_wh + jax.random.uniform(k4, (N, 2), jnp.float32) * 2.0
    pr_bboxes = jnp.concatenate([pr_tl, pr_tl + pr_wh], axis=1)      # (N, 4) xyxy

    loss_mean = GIOULoss(eps=1e-5, reduction="mean")(pr_bboxes, gt_bboxes)
    loss_none = GIOULoss(eps=1e-5, reduction="none")(pr_bboxes, gt_bboxes)
    loss_sum = GIOULoss(eps=1e-5, reduction="sum")(pr_bboxes, gt_bboxes)
    loss_n1 = GIOULoss(eps=1e-5, reduction="none")(pr_bboxes[:1], gt_bboxes[:1])
    jax.block_until_ready((loss_mean, loss_none, loss_sum, loss_n1))

    ref_mean = _reference_giou_loss(pr_bboxes, gt_bboxes, 1e-5, "mean")
    ref_none = _reference_giou_loss(pr_bboxes, gt_bboxes, 1e-5, "none")
    ref_sum = _reference_giou_loss(pr_bboxes, gt_bboxes, 1e-5, "sum")
    ref_n1 = _reference_giou_loss(pr_bboxes[:1], gt_bboxes[:1], 1e-5, "none")

    assert loss_none.shape == ref_none.shape, (loss_none.shape, ref_none.shape)
    assert loss_n1.shape == ref_n1.shape, (loss_n1.shape, ref_n1.shape)
    assert jnp.allclose(loss_mean, ref_mean, rtol=1e-4, atol=1e-4), (loss_mean, ref_mean)
    assert jnp.allclose(loss_none, ref_none, rtol=1e-4, atol=1e-4), (loss_none, ref_none)
    assert jnp.allclose(loss_sum, ref_sum, rtol=1e-4, atol=1e-4), (loss_sum, ref_sum)
    assert jnp.allclose(loss_n1, ref_n1, rtol=1e-4, atol=1e-4), (loss_n1, ref_n1)

    print("KERNEL_OK")
</pallas_src>

<mosaic_0001>
module attributes {stable_mosaic.version = 11 : i64} {
  func.func @_giou_loss_kernel(%arg0: memref<4x128xf32, #tpu.memory_space<vmem>>, %arg1: memref<4x128xf32, #tpu.memory_space<vmem>>, %arg2: memref<2x128xf32, #tpu.memory_space<vmem>>) attributes {dimension_semantics = [], scalar_prefetch = 0 : i64, scratch_operands = 0 : i64, tpu.core_type = #tpu.core_type<tc>} {
    %c0 = arith.constant 0 : index
    %c0_0 = arith.constant 0 : index
    %0 = vector.load %arg0[%c0, %c0_0] : memref<4x128xf32, #tpu.memory_space<vmem>>, vector<4x128xf32>
    %c0_1 = arith.constant 0 : index
    %c0_2 = arith.constant 0 : index
    %1 = vector.load %arg1[%c0_1, %c0_2] : memref<4x128xf32, #tpu.memory_space<vmem>>, vector<4x128xf32>
    %2 = arith.maximumf %0, %1 : vector<4x128xf32>
    %3 = arith.minimumf %0, %1 : vector<4x128xf32>
    %4 = vector.extract_strided_slice %0 {offsets = [2, 0], sizes = [2, 128], strides = [1, 1]} : vector<4x128xf32> to vector<2x128xf32>
    %5 = vector.extract_strided_slice %0 {offsets = [0, 0], sizes = [2, 128], strides = [1, 1]} : vector<4x128xf32> to vector<2x128xf32>
    %6 = arith.subf %4, %5 : vector<2x128xf32>
    %7 = vector.extract_strided_slice %1 {offsets = [2, 0], sizes = [2, 128], strides = [1, 1]} : vector<4x128xf32> to vector<2x128xf32>
    %8 = vector.extract_strided_slice %1 {offsets = [0, 0], sizes = [2, 128], strides = [1, 1]} : vector<4x128xf32> to vector<2x128xf32>
    %9 = arith.subf %7, %8 : vector<2x128xf32>
    %10 = vector.extract_strided_slice %6 {offsets = [0, 0], sizes = [1, 128], strides = [1, 1]} : vector<2x128xf32> to vector<1x128xf32>
    %11 = vector.extract_strided_slice %6 {offsets = [1, 0], sizes = [1, 128], strides = [1, 1]} : vector<2x128xf32> to vector<1x128xf32>
    %12 = arith.mulf %10, %11 : vector<1x128xf32>
    %13 = vector.extract_strided_slice %9 {offsets = [0, 0], sizes = [1, 128], strides = [1, 1]} : vector<2x128xf32> to vector<1x128xf32>
    %14 = vector.extract_strided_slice %9 {offsets = [1, 0], sizes = [1, 128], strides = [1, 1]} : vector<2x128xf32> to vector<1x128xf32>
    %15 = arith.mulf %13, %14 : vector<1x128xf32>
    %16 = vector.extract_strided_slice %3 {offsets = [2, 0], sizes = [2, 128], strides = [1, 1]} : vector<4x128xf32> to vector<2x128xf32>
    %17 = vector.extract_strided_slice %2 {offsets = [0, 0], sizes = [2, 128], strides = [1, 1]} : vector<4x128xf32> to vector<2x128xf32>
    %18 = arith.subf %16, %17 : vector<2x128xf32>
    %cst = arith.constant 9.99999974E-6 : f32
    %19 = vector.broadcast %cst : f32 to vector<2x128xf32>
    %20 = arith.addf %18, %19 : vector<2x128xf32>
    %cst_3 = arith.constant 0.000000e+00 : f32
    %21 = vector.broadcast %cst_3 : f32 to vector<2x128xf32>
    %22 = arith.maximumf %20, %21 : vector<2x128xf32>
    %23 = vector.extract_strided_slice %22 {offsets = [0, 0], sizes = [1, 128], strides = [1, 1]} : vector<2x128xf32> to vector<1x128xf32>
    %24 = vector.extract_strided_slice %22 {offsets = [1, 0], sizes = [1, 128], strides = [1, 1]} : vector<2x128xf32> to vector<1x128xf32>
    %25 = arith.mulf %23, %24 : vector<1x128xf32>
    %26 = arith.addf %12, %15 : vector<1x128xf32>
    %27 = arith.subf %26, %25 : vector<1x128xf32>
    %28 = arith.divf %25, %27 : vector<1x128xf32>
    %29 = vector.extract_strided_slice %2 {offsets = [2, 0], sizes = [2, 128], strides = [1, 1]} : vector<4x128xf32> to vector<2x128xf32>
    %30 = vector.extract_strided_slice %3 {offsets = [0, 0], sizes = [2, 128], strides = [1, 1]} : vector<4x128xf32> to vector<2x128xf32>
    %31 = arith.subf %29, %30 : vector<2x128xf32>
    %cst_4 = arith.constant 9.99999974E-6 : f32
    %32 = vector.broadcast %cst_4 : f32 to vector<2x128xf32>
    %33 = arith.addf %31, %32 : vector<2x128xf32>
    %cst_5 = arith.constant 0.000000e+00 : f32
    %34 = vector.broadcast %cst_5 : f32 to vector<2x128xf32>
    %35 = arith.maximumf %33, %34 : vector<2x128xf32>
    %36 = vector.extract_strided_slice %35 {offsets = [0, 0], sizes = [1, 128], strides = [1, 1]} : vector<2x128xf32> to vector<1x128xf32>
    %37 = vector.extract_strided_slice %35 {offsets = [1, 0], sizes = [1, 128], strides = [1, 1]} : vector<2x128xf32> to vector<1x128xf32>
    %38 = arith.mulf %36, %37 : vector<1x128xf32>
    %cst_6 = arith.constant 1.000000e+00 : f32
    %39 = vector.broadcast %cst_6 : f32 to vector<1x128xf32>
    %40 = arith.divf %39, %38 : vector<1x128xf32>
    %41 = vector.extract_strided_slice %0 {offsets = [0, 0], sizes = [2, 128], strides = [1, 1]} : vector<4x128xf32> to vector<2x128xf32>
    %42 = vector.extract_strided_slice %0 {offsets = [0, 0], sizes = [2, 128], strides = [1, 1]} : vector<4x128xf32> to vector<2x128xf32>
    %43 = arith.mulf %41, %42 : vector<2x128xf32>
    %44 = vector.extract_strided_slice %1 {offsets = [0, 0], sizes = [2, 128], strides = [1, 1]} : vector<4x128xf32> to vector<2x128xf32>
    %45 = vector.extract_strided_slice %1 {offsets = [0, 0], sizes = [2, 128], strides = [1, 1]} : vector<4x128xf32> to vector<2x128xf32>
    %46 = arith.mulf %44, %45 : vector<2x128xf32>
    %47 = arith.addf %43, %46 : vector<2x128xf32>
    %48 = tpu.concatenate %28, %40 in 0 : vector<1x128xf32>, vector<1x128xf32> -> vector<2x128xf32>
    %49 = tpu.iota {dimensions = array<i32: 1>} : vector<2x128xi32>
    %c0_i32 = arith.constant 0 : i32
    %50 = vector.broadcast %c0_i32 : i32 to vector<2x128xi32>
    %51 = arith.cmpi eq, %49, %50 : vector<2x128xi32>
    %cst_7 = arith.constant 0.000000e+00 : f32
    %52 = vector.broadcast %cst_7 : f32 to vector<2x128xf32>
    %53 = arith.select %51, %48, %52 : vector<2x128xi1>, vector<2x128xf32>
    %cst_8 = arith.constant dense<0.000000e+00> : vector<2xf32>
    %54 = vector.multi_reduction <add>, %53, %cst_8 [1] : vector<2x128xf32> to vector<2xf32>
    %55 = vector.shape_cast %54 : vector<2xf32> to vector<2x1xf32>
    %c1_i32 = arith.constant 1 : i32
    %56 = vector.broadcast %c1_i32 : i32 to vector<2x128xi32>
    %57 = arith.cmpi eq, %49, %56 : vector<2x128xi32>
    %cst_9 = arith.constant 0.000000e+00 : f32
    %58 = vector.broadcast %cst_9 : f32 to vector<2x128xf32>
    %59 = arith.select %57, %48, %58 : vector<2x128xi1>, vector<2x128xf32>
    %cst_10 = arith.constant dense<0.000000e+00> : vector<2xf32>
    %60 = vector.multi_reduction <add>, %59, %cst_10 [1] : vector<2x128xf32> to vector<2xf32>
    %61 = vector.shape_cast %60 : vector<2xf32> to vector<2x1xf32>
    %62 = vector.extract_strided_slice %55 {offsets = [0, 0], sizes = [1, 1], strides = [1, 1]} : vector<2x1xf32> to vector<1x1xf32>
    %63 = vector.extract_strided_slice %55 {offsets = [1, 0], sizes = [1, 1], strides = [1, 1]} : vector<2x1xf32> to vector<1x1xf32>
    %64 = vector.extract_strided_slice %61 {offsets = [0, 0], sizes = [1, 1], strides = [1, 1]} : vector<2x1xf32> to vector<1x1xf32>
    %65 = vector.extract_strided_slice %61 {offsets = [1, 0], sizes = [1, 1], strides = [1, 1]} : vector<2x1xf32> to vector<1x1xf32>
    %cst_11 = arith.constant 2.000000e+00 : f32
    %66 = vector.broadcast %cst_11 : f32 to vector<1x1xf32>
    %67 = arith.subf %66, %62 : vector<1x1xf32>
    %68 = vector.extract_strided_slice %47 {offsets = [0, 0], sizes = [1, 128], strides = [1, 1]} : vector<2x128xf32> to vector<1x128xf32>
    %69 = vector.broadcast %63 : vector<1x1xf32> to vector<1x128xf32>
    %70 = arith.mulf %68, %69 : vector<1x128xf32>
    %71 = vector.broadcast %67 : vector<1x1xf32> to vector<1x128xf32>
    %72 = arith.subf %71, %70 : vector<1x128xf32>
    %cst_12 = arith.constant 2.000000e+00 : f32
    %73 = vector.broadcast %cst_12 : f32 to vector<1x1xf32>
    %74 = arith.subf %73, %64 : vector<1x1xf32>
    %75 = vector.extract_strided_slice %47 {offsets = [1, 0], sizes = [1, 128], strides = [1, 1]} : vector<2x128xf32> to vector<1x128xf32>
    %76 = vector.broadcast %65 : vector<1x1xf32> to vector<1x128xf32>
    %77 = arith.mulf %75, %76 : vector<1x128xf32>
    %78 = vector.broadcast %74 : vector<1x1xf32> to vector<1x128xf32>
    %79 = arith.subf %78, %77 : vector<1x128xf32>
    %80 = tpu.concatenate %72, %79 in 0 : vector<1x128xf32>, vector<1x128xf32> -> vector<2x128xf32>
    %c0_13 = arith.constant 0 : index
    %c0_14 = arith.constant 0 : index
    %81 = vector.load %arg2[%c0_13, %c0_14] : memref<2x128xf32, #tpu.memory_space<vmem>>, vector<2x128xf32>
    tpu.vector_store %arg2[%c0_13, %c0_14], %80 {strides = array<i32>} : memref<2x128xf32, #tpu.memory_space<vmem>>, vector<2x128xf32>,
    return
  }
}

</mosaic_0001>

<llo_original>
// kernel: _giou_loss_impl.1
$region0: #{_giou_loss_impl.1}
  #allocation0 [shape = 'u32[]', space=smem, size = 0x4, offset = 0x4, fixed_abs, tag = 'smem constant byte address 0x4 - core index']
  #allocation1 [shape = 'u32[144,128]{1,0:T(1,128)}', space=vmem, size = 0x12000, scoped, tag = 'internal scratch']
  %s0 = inlined_call_operand.vmem [shape: f32[4,128], index: 0, kind: input, shape index: {}]
  %s1 = inlined_call_operand.vmem [shape: f32[4,128], index: 1, kind: input, shape index: {}]
  %s2 = inlined_call_operand.vmem [shape: f32[2,128], index: 2, kind: output, shape index: {}]
  %s3 = sld [smem:[#allocation0]]
  $region18: #{_giou_loss_impl.1} parent=0
    _
  %s5 = ssub.s32 1, %s3
  %s6 = scalar_select 0, %s5, %s3
  // Predicated region
  $region2: #{_giou_loss_impl.1} parent=0 // pred_check
    _
  $region3: #{_giou_loss_impl.1} parent=0 // pred_check_branch
    %8 = sbr.rel (0) target = $region5
  $region4: #{_giou_loss_impl.1} parent=0 // pred_region
    _
  $region5: #{_giou_loss_impl.1} parent=0 // pred_fallthru
    _
  // Predicated region
  $region6: #{_giou_loss_impl.1} parent=0 // pred_check
    _
  $region7: #{_giou_loss_impl.1} parent=0 // pred_check_branch
    %10 = sbr.rel (0) target = $region9
  $region8: #{_giou_loss_impl.1} parent=0 // pred_region
    _
  $region9: #{_giou_loss_impl.1} parent=0 // pred_fallthru
    _
  %v11 = vld [vmem:[%s0] sm:$0xf]
  %v12 = vld [vmem:[%s1] sm:$0xf]
  %v13 = vmax.f32 %v11, %v12
  %v14 = vmin.f32 %v11, %v12
  %v16 = vrot.slane %v11, 6
  %v18 = vsub.f32 %v11, %v16
  %v20 = vrot.slane %v12, 6
  %v22 = vsub.f32 %v12, %v20
  %v24 = vrot.slane %v18, 1
  %v26 = vmul.f32 %v18, %v24
  %v28 = vrot.slane %v22, 1
  %v30 = vmul.f32 %v22, %v28
  %v32 = vrot.slane %v13, 6
  %v34 = vsub.f32 %v14, %v32
  %v35 = vadd.f32 %v34, 1e-05
  %v36 = vmax.f32 %v35, 0.0
  %v38 = vrot.slane %v36, 1
  %v40 = vmul.f32 %v36, %v38
  %v41 = vadd.f32 %v26, %v30
  %v42 = vsub.f32 %v41, %v40
  %v43 = vrcp.pop %v42
  %v44 = vmul.f32 %v40, %v43
  %v46 = vrot.slane %v14, 6
  %v48 = vsub.f32 %v13, %v46
  %v49 = vadd.f32 %v48, 1e-05
  %v50 = vmax.f32 %v49, 0.0
  %v52 = vrot.slane %v50, 1
  %v54 = vmul.f32 %v50, %v52
  %v55 = vrcp.pop %v54
  %v56 = vmul.f32 1.0, %v55
  %v57 = vmul.f32 %v11, %v11
  %v58 = vmul.f32 %v12, %v12
  %v59 = vadd.f32 %v57, %v58
  %v61 = vrot.slane %v44, 2
  %v64 = vrot.slane %v56, 1
  %vm66 = vcmask 1040384
  %v67 = vsel %vm66, %v61, %v64
  %v68 = vlaneseq
  %v69 = vand.u32 %v68, 127
  %vm70 = vcmp.eq.s32.totalorder %v69, 0
  %v71 = vsel %vm70, %v67, 0.0
  %vm72 = vcmask 1041408
  %v73 = vsel %vm72, %v71, 0.0
  %74 = vadd.xlane.f32.xlu0 %v73
  %v75 = vpop.xlane.xlu0 %74
  %vm76 = vcmp.eq.s32.totalorder %v69, 1
  %v77 = vsel %vm76, %v67, 0.0
  %v78 = vsel %vm72, %v77, 0.0
  %79 = vadd.xlane.f32.xlu0 %v78
  %v80 = vpop.xlane.xlu0 %79
  %v81 = vsub.f32 2.0, %v75
  %v83 = vrot.slane %v75, 1
  %v85 = vmul.f32 %v59, %v83
  %v86 = vsub.f32 %v81, %v85
  %v87 = vsub.f32 2.0, %v80
  %v88 = vmul.f32 %v59, %v80
  %v90 = vrot.slane %v88, 1
  %v92 = vsub.f32 %v87, %v90
  %v94 = vrot.slane %v92, 7
  %v96 = vsel %vm66, %v86, %v94
  %97 = vst [vmem:[%s2] sm:$0x3] %v96
  // Predicated region
  $region10: #{_giou_loss_impl.1} parent=0 // pred_check
    _
  $region11: #{_giou_loss_impl.1} parent=0 // pred_check_branch
    %99 = sbr.rel (0) target = $region13
  $region12: #{_giou_loss_impl.1} parent=0 // pred_region
    _
  $region13: #{_giou_loss_impl.1} parent=0 // pred_fallthru
    _
  // Predicated region
  $region14: #{_giou_loss_impl.1} parent=0 // pred_check
    _
  $region15: #{_giou_loss_impl.1} parent=0 // pred_check_branch
    %101 = sbr.rel (0) target = $region17
  $region16: #{_giou_loss_impl.1} parent=0 // pred_region
    _
  $region17: #{_giou_loss_impl.1} parent=0 // pred_fallthru
    _

</llo_original>
